<compile_context>
chip_gen: v6e
topology: v6e:2x2x1
jax: 0.10.0
libtpu: 0.0.40
codegen_flags: <defaults>
</compile_context>

<pallas_src>
import functools

import jax
import jax.numpy as jnp
from jax import lax
from jax.experimental import pallas as pl
from jax.experimental.pallas import tpu as pltpu


_LM_TILE = 1024       # lm_head vocab tile (vocab padded up to a multiple of this)
_ROW_TILE = 512       # desired row (M) tile for streamed matmul kernels
_MLP_I_TILE = 512     # desired intermediate (I) tile for the MLP accumulator


def _round_up(x, m):
    return ((x + m - 1) // m) * m


@functools.lru_cache(maxsize=None)
def _vmem_limit_bytes():
    """Generation-aware VMEM limit: ~75% of per-core capacity
    (~96 MiB on v5e/v6e's 128 MiB, ~48 MiB on v7x's 64 MiB)."""
    try:
        cap = getattr(pltpu.get_tpu_info(), "vmem_capacity_bytes", None)
        if cap:
            return max(32 * 1024 * 1024, int(cap) * 3 // 4)
    except Exception:
        pass
    return 48 * 1024 * 1024


def _cp(semantics):
    return pltpu.CompilerParams(dimension_semantics=tuple(semantics),
                                vmem_limit_bytes=_vmem_limit_bytes())


# ---- single-buffered specs for constant-index (resident weight/bias) blocks ----

_BUFFERED1_OK = None


def _probe_copy_kernel(x_ref, o_ref):
    o_ref[...] = x_ref[...]


def _buffered1_supported():
    """One-time probe: does this JAX accept pipeline_mode=pl.Buffered(1)?"""
    global _BUFFERED1_OK
    if _BUFFERED1_OK is None:
        try:
            spec = pl.BlockSpec((8, 128), lambda i: (0, 0),
                                pipeline_mode=pl.Buffered(1))
            y = pl.pallas_call(
                _probe_copy_kernel,
                out_shape=jax.ShapeDtypeStruct((8, 128), jnp.float32),
                grid=(1,),
                in_specs=[spec],
                out_specs=pl.BlockSpec((8, 128), lambda i: (0, 0)),
            )(jnp.zeros((8, 128), jnp.float32))
            jax.block_until_ready(y)
            _BUFFERED1_OK = True
        except Exception:
            _BUFFERED1_OK = False
    return _BUFFERED1_OK


def _resident_spec(block_shape, index_map):
    """Constant-index block (weights/biases/LN params): buffer_count=1 so the
    resident block is not needlessly double-buffered (halves its VMEM)."""
    if _buffered1_supported():
        return pl.BlockSpec(block_shape, index_map, pipeline_mode=pl.Buffered(1))
    return pl.BlockSpec(block_shape, index_map)


# ------------------------------- tiling helpers --------------------------------

def _row_tiling(M, desired=_ROW_TILE):
    """Row tile + padded M.  Pads M to a tile multiple instead of collapsing to a
    single huge block (keeps pipelining / 2-TC sharding at ragged sizes)."""
    if M <= desired:
        tm = _round_up(M, 8)
        return tm, tm
    return desired, _round_up(M, desired)


def _divisor_tile(N, desired, floor=128):
    t = desired
    while t >= floor:
        if N % t == 0:
            return t
        t //= 2
    return N


def _pad_rows(x, m_pad):
    m = x.shape[0]
    if m_pad == m:
        return x
    return jnp.pad(x, ((0, m_pad - m), (0, 0)))


# ----------------------------- Pallas kernel bodies ----------------------------

def _ln_matmul_kernel(x_ref, g_ref, b_ref, w_ref, o_ref):
    # LayerNorm (fp32) -> bf16 matmul with fp32 accumulation.
    x = x_ref[...].astype(jnp.float32)
    mu = jnp.mean(x, axis=-1, keepdims=True)
    var = jnp.mean((x - mu) ** 2, axis=-1, keepdims=True)
    a = ((x - mu) * lax.rsqrt(var + 1e-5)) * g_ref[...] + b_ref[...]
    o_ref[...] = jnp.dot(a.astype(jnp.bfloat16), w_ref[...],
                         preferred_element_type=jnp.float32).astype(o_ref.dtype)


def _layernorm_kernel(x_ref, g_ref, b_ref, o_ref):
    x = x_ref[...].astype(jnp.float32)
    mu = jnp.mean(x, axis=-1, keepdims=True)
    var = jnp.mean((x - mu) ** 2, axis=-1, keepdims=True)
    o_ref[...] = (((x - mu) * lax.rsqrt(var + 1e-5)) * g_ref[...]
                  + b_ref[...]).astype(o_ref.dtype)


def _matmul_bias_resid_kernel(x_ref, w_ref, b_ref, r_ref, o_ref):
    acc = jnp.dot(x_ref[...].astype(jnp.bfloat16), w_ref[...],
                  preferred_element_type=jnp.float32)
    o_ref[...] = (acc + b_ref[...] + r_ref[...].astype(jnp.float32)).astype(o_ref.dtype)


def _matmul_kernel(x_ref, w_ref, o_ref):
    o_ref[...] = jnp.dot(x_ref[...], w_ref[...],
                         preferred_element_type=jnp.float32).astype(o_ref.dtype)


def _attn_head_kernel(qkv_ref, o_ref):
    # One (batch, head) per grid step: only one (S,S) fp32 score tile live at a
    # time, no concatenate, head axis usable for 2-TC sharding.
    q = qkv_ref[0, 0, 0]                                   # (S, hd) bf16
    k = qkv_ref[1, 0, 0]
    v = qkv_ref[2, 0, 0]
    s = lax.dot_general(q, k, (((1,), (1,)), ((), ())),
                        preferred_element_type=jnp.float32)  # (S, S) fp32
    seq = s.shape[0]
    row = lax.broadcasted_iota(jnp.int32, (seq, 1), 0)
    col = lax.broadcasted_iota(jnp.int32, (1, seq), 1)
    # GPT-Neo semantics: no 1/sqrt(head_dim) scale, causal mask with finite fill.
    s = jnp.where(col <= row, s, jnp.float32(-1e30))
    s = s - jnp.max(s, axis=-1, keepdims=True)
    p = jnp.exp(s)
    p = p * pl.reciprocal(jnp.sum(p, axis=-1, keepdims=True), approx=True)
    o_ref[0, 0] = jnp.dot(p.astype(v.dtype), v,
                          preferred_element_type=jnp.float32).astype(o_ref.dtype)


def _ln_mlp_resid_kernel(x_ref, g_ref, b_ref, wfc_ref, bfc_ref, wpr_ref, bpr_ref,
                         o_ref, acc_ref):
    # LN -> c_fc[:, k-tile] -> gelu_new -> c_proj[k-tile, :] accumulated; bias +
    # residual + store at the last I-tile.
    k = pl.program_id(1)

    @pl.when(k == 0)
    def _():
        acc_ref[...] = jnp.zeros_like(acc_ref)

    x = x_ref[...].astype(jnp.float32)
    mu = jnp.mean(x, axis=-1, keepdims=True)
    var = jnp.mean((x - mu) ** 2, axis=-1, keepdims=True)
    a = ((x - mu) * lax.rsqrt(var + 1e-5)) * g_ref[...] + b_ref[...]
    h = jnp.dot(a.astype(jnp.bfloat16), wfc_ref[...],
                preferred_element_type=jnp.float32) + bfc_ref[...]
    # GPT-Neo "gelu_new" (tanh approximation), fp32
    h = 0.5 * h * (1.0 + jnp.tanh(0.7978845608028654 * (h + 0.044715 * h * h * h)))
    acc_ref[...] += jnp.dot(h.astype(jnp.bfloat16), wpr_ref[...],
                            preferred_element_type=jnp.float32)

    @pl.when(k == pl.num_programs(1) - 1)
    def _():
        o_ref[...] = (acc_ref[...] + bpr_ref[...] + x).astype(o_ref.dtype)


# ------------------------------ kernel wrappers ---------------------------------

def ln_qkv(x2d, gamma, beta, wqkv):
    """Fused LayerNorm + merged q/k/v projection.  x2d (M,H) f32 -> (M,3H) bf16."""
    M, H = x2d.shape
    N = wqkv.shape[1]
    tm, m_pad = _row_tiling(M)
    xp = _pad_rows(x2d, m_pad)
    out = pl.pallas_call(
        _ln_matmul_kernel,
        out_shape=jax.ShapeDtypeStruct((m_pad, N), jnp.bfloat16),
        grid=(m_pad // tm,),
        in_specs=[pl.BlockSpec((tm, H), lambda i: (i, 0)),
                  _resident_spec((1, H), lambda i: (0, 0)),
                  _resident_spec((1, H), lambda i: (0, 0)),
                  _resident_spec((H, N), lambda i: (0, 0))],     # resident, 1-buffered
        out_specs=pl.BlockSpec((tm, N), lambda i: (i, 0)),
        compiler_params=_cp(("parallel",)),
    )(xp, gamma, beta, wqkv)
    return out if m_pad == M else out[:M]


def causal_attention(qkv2d, batch, seq, num_heads):
    """GPT-Neo attention, one (batch, head) pair per grid step."""
    H3 = qkv2d.shape[1]
    H = H3 // 3
    hd = H // num_heads
    # Head-major re-layout in glue (cheap XLA transpose) so every Pallas block has
    # full-extent last-two dims (no dynamic lane-offset slices in-kernel).
    # TODO(synk): flash-style KV-tiled online-softmax for S >~ 1-2k (v7x 64 MiB VMEM).
    qkv5 = qkv2d.reshape(batch, seq, 3, num_heads, hd).transpose(2, 0, 3, 1, 4)
    out = pl.pallas_call(
        _attn_head_kernel,
        out_shape=jax.ShapeDtypeStruct((batch, num_heads, seq, hd), qkv2d.dtype),
        grid=(batch, num_heads),
        in_specs=[pl.BlockSpec((3, 1, 1, seq, hd), lambda b, h: (0, b, h, 0, 0))],
        out_specs=pl.BlockSpec((1, 1, seq, hd), lambda b, h: (b, h, 0, 0)),
        compiler_params=_cp(("parallel", "parallel")),
    )(qkv5)
    return out.transpose(0, 2, 1, 3).reshape(batch * seq, H)


def linear_bias_residual(x2d, w, b, resid2d):
    """out_proj: y = x @ w + b + resid.  x (M,K) bf16, w (K,N) bf16, resid f32."""
    M, K = x2d.shape
    N = w.shape[1]
    tm, m_pad = _row_tiling(M)
    xp = _pad_rows(x2d, m_pad)
    rp = _pad_rows(resid2d, m_pad)
    out = pl.pallas_call(
        _matmul_bias_resid_kernel,
        out_shape=jax.ShapeDtypeStruct((m_pad, N), jnp.float32),
        grid=(m_pad // tm,),
        in_specs=[pl.BlockSpec((tm, K), lambda i: (i, 0)),
                  _resident_spec((K, N), lambda i: (0, 0)),
                  _resident_spec((1, N), lambda i: (0, 0)),
                  pl.BlockSpec((tm, N), lambda i: (i, 0))],
        out_specs=pl.BlockSpec((tm, N), lambda i: (i, 0)),
        compiler_params=_cp(("parallel",)),
    )(xp, w, b, rp)
    return out if m_pad == M else out[:M]


def ln_mlp_residual(x2d, gamma, beta, wfc, bfc, wpr, bpr):
    """Fused LN -> c_fc -> gelu_new -> c_proj -> +bias -> +residual, tiled over the
    intermediate dim with an fp32 VMEM accumulator (bounded VMEM on v7x)."""
    M, H = x2d.shape
    dI = wfc.shape[1]
    tm, m_pad = _row_tiling(M)
    tI = _divisor_tile(dI, _MLP_I_TILE)
    ki = dI // tI
    xp = _pad_rows(x2d, m_pad)
    stream = _resident_spec if ki == 1 else pl.BlockSpec   # resident if only 1 I-tile
    out = pl.pallas_call(
        _ln_mlp_resid_kernel,
        out_shape=jax.ShapeDtypeStruct((m_pad, H), jnp.float32),
        grid=(m_pad // tm, ki),
        in_specs=[pl.BlockSpec((tm, H), lambda i, k: (i, 0)),
                  _resident_spec((1, H), lambda i, k: (0, 0)),
                  _resident_spec((1, H), lambda i, k: (0, 0)),
                  stream((H, tI), lambda i, k: (0, k)),
                  stream((1, tI), lambda i, k: (0, k)),
                  stream((tI, H), lambda i, k: (k, 0)),
                  _resident_spec((1, H), lambda i, k: (0, 0))],
        out_specs=pl.BlockSpec((tm, H), lambda i, k: (i, 0)),
        scratch_shapes=[pltpu.VMEM((tm, H), jnp.float32)],
        compiler_params=_cp(("parallel", "arbitrary")),
    )(xp, gamma, beta, wfc, bfc, wpr, bpr)
    return out if m_pad == M else out[:M]


def final_layernorm(x, gamma, beta):
    """Final LN applied ONCE to the last-token activations (hoisted out of lm_head)."""
    B, H = x.shape
    return pl.pallas_call(
        _layernorm_kernel,
        out_shape=jax.ShapeDtypeStruct((B, H), jnp.bfloat16),
        grid=(1,),
        in_specs=[pl.BlockSpec((B, H), lambda i: (0, 0)),
                  pl.BlockSpec((1, H), lambda i: (0, 0)),
                  pl.BlockSpec((1, H), lambda i: (0, 0))],
        out_specs=pl.BlockSpec((B, H), lambda i: (0, 0)),
        compiler_params=_cp(("parallel",)),
    )(x, gamma, beta)


def lm_head_matmul(x_bf, w_pad, vocab):
    """Vocab-tiled streamed matmul over the (H, V_pad) lm_head weight."""
    B, H = x_bf.shape
    Vp = w_pad.shape[1]
    tn = _LM_TILE
    logits = pl.pallas_call(
        _matmul_kernel,
        out_shape=jax.ShapeDtypeStruct((B, Vp), jnp.float32),
        grid=(Vp // tn,),
        in_specs=[_resident_spec((B, H), lambda j: (0, 0)),
                  pl.BlockSpec((H, tn), lambda j: (0, j))],
        out_specs=pl.BlockSpec((B, tn), lambda j: (0, j)),
        compiler_params=_cp(("parallel",)),
    )(x_bf, w_pad)
    return logits[:, :vocab]


# ----------------------------- model forward (glue) -----------------------------

def prepare_params(p):
    """One-time conversion: torch (out,in) weights -> (in,out) bf16 kernel layout,
    q/k/v concatenated, vocab padded to the lm_head tile, biases/LN params fp32.
    Folding the split=2 shards back into full matrices is exactly the
    FlyweightWarpper sum (incl. the /split on out_proj / c_proj biases)."""
    bf = jnp.bfloat16
    H = p["wq"].shape[1]
    lm = p["lm_head"].T.astype(bf)                                  # (H, V)
    V = lm.shape[1]
    v_pad = _round_up(V, _LM_TILE)
    if v_pad != V:
        lm = jnp.pad(lm, ((0, 0), (0, v_pad - V)))
    return {
        "H": H,
        "num_heads": p["num_heads"],
        "vocab": V,
        "wte": p["wte"], "wpe": p["wpe"],
        "ln1_g": p["ln1_g"].reshape(1, -1).astype(jnp.float32),
        "ln1_b": p["ln1_b"].reshape(1, -1).astype(jnp.float32),
        "wqkv": jnp.concatenate([p["wq"].T, p["wk"].T, p["wv"].T], axis=1).astype(bf),
        "wo_t": p["wo"].T.astype(bf),
        "bo": p["bo"].reshape(1, -1).astype(jnp.float32),
        "ln2_g": p["ln2_g"].reshape(1, -1).astype(jnp.float32),
        "ln2_b": p["ln2_b"].reshape(1, -1).astype(jnp.float32),
        "wfc_t": p["wfc"].T.astype(bf),
        "bfc": p["bfc"].reshape(1, -1).astype(jnp.float32),
        "wpr_t": p["wpr"].T.astype(bf),
        "bpr": p["bpr"].reshape(1, -1).astype(jnp.float32),
        "lnf_g": p["lnf_g"].reshape(1, -1).astype(jnp.float32),
        "lnf_b": p["lnf_b"].reshape(1, -1).astype(jnp.float32),
        "lm_head_t": lm,
    }


def gpt2warpper_forward(kp, input_ids):
    B, S = input_ids.shape
    H = kp["H"]
    nh = kp["num_heads"]

    # embeddings (glue gather + positional add; no clean Pallas gather needed here)
    h = kp["wte"][input_ids] + kp["wpe"][:S][None, :, :]            # (B,S,H) f32
    h2 = h.reshape(B * S, H)

    # ----- transformer block: attention -----
    qkv = ln_qkv(h2, kp["ln1_g"], kp["ln1_b"], kp["wqkv"])           # (B*S,3H) bf16
    attn = causal_attention(qkv, B, S, nh)                           # (B*S,H)  bf16
    h2 = linear_bias_residual(attn, kp["wo_t"], kp["bo"], h2)        # (B*S,H)  f32

    # ----- transformer block: MLP (I-tiled accumulator) -----
    h2 = ln_mlp_residual(h2, kp["ln2_g"], kp["ln2_b"],
                         kp["wfc_t"], kp["bfc"], kp["wpr_t"], kp["bpr"])

    # ----- OutputWarpper(lm_head): final LN once + vocab-tiled projection -----
    last = h2.reshape(B, S, H)[:, -1, :]                             # (B,H)
    last_ln = final_layernorm(last, kp["lnf_g"], kp["lnf_b"])        # (B,H) bf16
    logits = lm_head_matmul(last_ln, kp["lm_head_t"], kp["vocab"])
    return logits                                                    # (B,vocab) f32


# ------------------------------------ main ---------------------------------------

def init_params(key, vocab, max_pos, H, nh, I):
    ks = jax.random.split(key, 12)
    n = lambda k, shape: (0.02 * jax.random.normal(k, shape)).astype(jnp.float32)
    return {
        "num_heads": nh,
        "wte": n(ks[0], (vocab, H)),
        "wpe": n(ks[1], (max_pos, H)),
        "ln1_g": jnp.ones((H,), jnp.float32), "ln1_b": jnp.zeros((H,), jnp.float32),
        "wq": n(ks[2], (H, H)), "wk": n(ks[3], (H, H)), "wv": n(ks[4], (H, H)),
        "wo": n(ks[5], (H, H)), "bo": n(ks[6], (H,)),
        "ln2_g": jnp.ones((H,), jnp.float32), "ln2_b": jnp.zeros((H,), jnp.float32),
        "wfc": n(ks[7], (I, H)), "bfc": n(ks[8], (I,)),
        "wpr": n(ks[9], (H, I)), "bpr": n(ks[10], (H,)),
        "lnf_g": jnp.ones((H,), jnp.float32), "lnf_b": jnp.zeros((H,), jnp.float32),
        "lm_head": n(ks[11], (vocab, H)),
    }


if __name__ == "__main__":
    B, S, H, nh, I, vocab = 2, 8, 32, 4, 128, 64   # split=2 is folded into full mats

    key = jax.random.PRNGKey(0)
    kp_key, id_key = jax.random.split(key)
    torch_params = init_params(kp_key, vocab=vocab, max_pos=S, H=H, nh=nh, I=I)
    kernel_params = prepare_params(torch_params)
    input_ids = jax.random.randint(id_key, (B, S), 0, vocab, dtype=jnp.int32)

    logits = gpt2warpper_forward(kernel_params, input_ids)
    logits = jax.block_until_ready(logits)
    assert logits.shape == (B, vocab), logits.shape
    assert bool(jnp.isfinite(logits).all())
    print("KERNEL_OK")
</pallas_src>

<mosaic_0001>
module attributes {stable_mosaic.version = 11 : i64} {
  func.func @_probe_copy_kernel(%arg0: i32, %arg1: memref<8x128xf32, #tpu.memory_space<vmem>>, %arg2: memref<8x128xf32, #tpu.memory_space<vmem>>) attributes {dimension_semantics = [#tpu.dimension_semantics<arbitrary>], iteration_bounds = array<i64: 1>, scalar_prefetch = 0 : i64, scratch_operands = 0 : i64, tpu.core_type = #tpu.core_type<tc>, window_params = [{pipeline_mode = #tpu.pipeline_mode<synchronous>, transform_indices = @transform_0, window_bounds = array<i64: 8, 128>}, {pipeline_mode = #tpu.pipeline_mode<synchronous>, transform_indices = @transform_1, window_bounds = array<i64: 8, 128>}]} {
    %c0 = arith.constant 0 : index
    %c0_0 = arith.constant 0 : index
    %0 = vector.load %arg1[%c0, %c0_0] : memref<8x128xf32, #tpu.memory_space<vmem>>, vector<8x128xf32>
    %c0_1 = arith.constant 0 : index
    %c0_2 = arith.constant 0 : index
    %1 = vector.load %arg2[%c0_1, %c0_2] : memref<8x128xf32, #tpu.memory_space<vmem>>, vector<8x128xf32>
    tpu.vector_store %arg2[%c0_1, %c0_2], %0 {strides = array<i32>} : memref<8x128xf32, #tpu.memory_space<vmem>>, vector<8x128xf32>,
    return
  }
  func.func @transform_0(%arg0: i32) -> (i32, i32) {
    %c0_i32 = arith.constant 0 : i32
    %c0_i32_0 = arith.constant 0 : i32
    %c0_i32_1 = arith.constant 0 : i32
    return %c0_i32, %c0_i32_0 : i32, i32
  }
  func.func @transform_1(%arg0: i32) -> (i32, i32) {
    %c0_i32 = arith.constant 0 : i32
    %c0_i32_0 = arith.constant 0 : i32
    %c0_i32_1 = arith.constant 0 : i32
    return %c0_i32, %c0_i32_0 : i32, i32
  }
}

module attributes {stable_mosaic.version = 11 : i64} {
  func.func @_ln_matmul_kernel(%arg0: i32, %arg1: memref<16x32xf32, #tpu.memory_space<vmem>>, %arg2: memref<1x32xf32, #tpu.memory_space<vmem>>, %arg3: memref<1x32xf32, #tpu.memory_space<vmem>>, %arg4: memref<32x96xbf16, #tpu.memory_space<vmem>>, %arg5: memref<16x96xbf16, #tpu.memory_space<vmem>>) attributes {dimension_semantics = [#tpu.dimension_semantics<parallel>], iteration_bounds = array<i64: 1>, scalar_prefetch = 0 : i64, scratch_operands = 0 : i64, tpu.core_type = #tpu.core_type<tc>, window_params = [{transform_indices = @transform_0, window_bounds = array<i64: 16, 32>}, {pipeline_mode = #tpu.pipeline_mode<synchronous>, transform_indices = @transform_1, window_bounds = array<i64: 1, 32>}, {pipeline_mode = #tpu.pipeline_mode<synchronous>, transform_indices = @transform_2, window_bounds = array<i64: 1, 32>}, {pipeline_mode = #tpu.pipeline_mode<synchronous>, transform_indices = @transform_3, window_bounds = array<i64: 32, 96>}, {transform_indices = @transform_4, window_bounds = array<i64: 16, 96>}]} {
    %c0 = arith.constant 0 : index
    %c0_0 = arith.constant 0 : index
    %0 = vector.load %arg1[%c0, %c0_0] : memref<16x32xf32, #tpu.memory_space<vmem>>, vector<16x32xf32>
    %cst = arith.constant dense<0.000000e+00> : vector<16xf32>
    %1 = vector.multi_reduction <add>, %0, %cst [1] : vector<16x32xf32> to vector<16xf32>
    %2 = vector.shape_cast %1 : vector<16xf32> to vector<16x1xf32>
    %cst_1 = arith.constant 3.200000e+01 : f32
    %3 = vector.broadcast %cst_1 : f32 to vector<16x1xf32>
    %4 = arith.divf %2, %3 : vector<16x1xf32>
    %5 = vector.broadcast %4 : vector<16x1xf32> to vector<16x32xf32>
    %6 = arith.subf %0, %5 : vector<16x32xf32>
    %7 = arith.mulf %6, %6 : vector<16x32xf32>
    %cst_2 = arith.constant dense<0.000000e+00> : vector<16xf32>
    %8 = vector.multi_reduction <add>, %7, %cst_2 [1] : vector<16x32xf32> to vector<16xf32>
    %9 = vector.shape_cast %8 : vector<16xf32> to vector<16x1xf32>
    %cst_3 = arith.constant 3.200000e+01 : f32
    %10 = vector.broadcast %cst_3 : f32 to vector<16x1xf32>
    %11 = arith.divf %9, %10 : vector<16x1xf32>
    %12 = vector.broadcast %4 : vector<16x1xf32> to vector<16x32xf32>
    %13 = arith.subf %0, %12 : vector<16x32xf32>
    %cst_4 = arith.constant 9.99999974E-6 : f32
    %14 = vector.broadcast %cst_4 : f32 to vector<16x1xf32>
    %15 = arith.addf %11, %14 : vector<16x1xf32>
    %16 = math.rsqrt %15 : vector<16x1xf32>
    %17 = vector.broadcast %16 : vector<16x1xf32> to vector<16x32xf32>
    %18 = arith.mulf %13, %17 : vector<16x32xf32>
    %c0_5 = arith.constant 0 : index
    %c0_6 = arith.constant 0 : index
    %19 = vector.load %arg2[%c0_5, %c0_6] : memref<1x32xf32, #tpu.memory_space<vmem>>, vector<1x32xf32>
    %20 = vector.broadcast %19 : vector<1x32xf32> to vector<16x32xf32>
    %21 = arith.mulf %18, %20 : vector<16x32xf32>
    %c0_7 = arith.constant 0 : index
    %c0_8 = arith.constant 0 : index
    %22 = vector.load %arg3[%c0_7, %c0_8] : memref<1x32xf32, #tpu.memory_space<vmem>>, vector<1x32xf32>
    %23 = vector.broadcast %22 : vector<1x32xf32> to vector<16x32xf32>
    %24 = arith.addf %21, %23 : vector<16x32xf32>
    %25 = arith.truncf %24 : vector<16x32xf32> to vector<16x32xbf16>
    %c0_9 = arith.constant 0 : index
    %c0_10 = arith.constant 0 : index
    %26 = vector.load %arg4[%c0_9, %c0_10] : memref<32x96xbf16, #tpu.memory_space<vmem>>, vector<32x96xbf16>
    %cst_11 = arith.constant dense<0.000000e+00> : vector<16x96xf32>
    %27 = tpu.matmul %25, %26, %cst_11 {dimension_numbers = #tpu.dot_dimension_numbers<[1], [0], [0], [1], [0, 0, 1, 1], [], []>} : vector<16x32xbf16>, vector<32x96xbf16>, vector<16x96xf32> -> vector<16x96xf32>
    %28 = arith.truncf %27 : vector<16x96xf32> to vector<16x96xbf16>
    %c0_12 = arith.constant 0 : index
    %c0_13 = arith.constant 0 : index
    %29 = vector.load %arg5[%c0_12, %c0_13] : memref<16x96xbf16, #tpu.memory_space<vmem>>, vector<16x96xbf16>
    tpu.vector_store %arg5[%c0_12, %c0_13], %28 {strides = array<i32>} : memref<16x96xbf16, #tpu.memory_space<vmem>>, vector<16x96xbf16>,
    return
  }
  func.func @transform_0(%arg0: i32) -> (i32, i32) {
    %c0_i32 = arith.constant 0 : i32
    %c0_i32_0 = arith.constant 0 : i32
    return %arg0, %c0_i32 : i32, i32
  }
  func.func @transform_1(%arg0: i32) -> (i32, i32) {
    %c0_i32 = arith.constant 0 : i32
    %c0_i32_0 = arith.constant 0 : i32
    %c0_i32_1 = arith.constant 0 : i32
    return %c0_i32, %c0_i32_0 : i32, i32
  }
  func.func @transform_2(%arg0: i32) -> (i32, i32) {
    %c0_i32 = arith.constant 0 : i32
    %c0_i32_0 = arith.constant 0 : i32
    %c0_i32_1 = arith.constant 0 : i32
    return %c0_i32, %c0_i32_0 : i32, i32
  }
  func.func @transform_3(%arg0: i32) -> (i32, i32) {
    %c0_i32 = arith.constant 0 : i32
    %c0_i32_0 = arith.constant 0 : i32
    %c0_i32_1 = arith.constant 0 : i32
    return %c0_i32, %c0_i32_0 : i32, i32
  }
  func.func @transform_4(%arg0: i32) -> (i32, i32) {
    %c0_i32 = arith.constant 0 : i32
    %c0_i32_0 = arith.constant 0 : i32
    return %arg0, %c0_i32 : i32, i32
  }
}

</mosaic_0001>

<llo_original>
// kernel: tpu_custom_call.1
$region0: #{tpu_custom_call.1}
  #allocation0 [shape = 'u32[]', space=smem, size = 0x4, offset = 0x4, fixed_abs, tag = 'smem constant byte address 0x4 - core index']
  #allocation1 [shape = 'u32[144,128]{1,0:T(1,128)}', space=vmem, size = 0x12000, scoped, tag = 'internal scratch']
  %s0 = inlined_call_operand.hbm [shape: f32[8,128], index: 0, kind: input, shape index: {}]
  %s1 = inlined_call_operand.hbm [shape: f32[8,128], index: 1, kind: output, shape index: {}]
  %s2 = sld [smem:[#allocation0]]
  $region18: #{tpu_custom_call.1} parent=0
    _
  %s4 = ssub.s32 1, %s2
  %s5 = scalar_select 0, %s4, %s2
  $region1: #{tpu_custom_call.1} parent=0
    #allocation2 [shape = 'u8[4096]{0}', space=vmem, size = 0x1000, scoped, tag = 'input window, operand 0, single buffered']
    #allocation3 [shape = 's32[1]{0}', space=sflag, size = 0x4, scoped, tag = 'scoped memory for tpu_custom_call.1']
    #allocation4 [shape = 's32[1]{0}', space=sflag, size = 0x4, scoped, tag = 'scoped memory for tpu_custom_call.1']
    #allocation5 [shape = 'u8[4096]{0}', space=vmem, size = 0x1000, scoped, tag = 'output window, operand 0, single buffered']
    %6 = vsyncpa [#allocation3], 0
    %7 = vsyncpa [#allocation4], 0
    // Predicated region
    $region2: #{tpu_custom_call.1} parent=1 // pred_check
      _
    $region3: #{tpu_custom_call.1} parent=1 // pred_check_branch
      %9 = sbr.rel (0) target = $region5
    $region4: #{tpu_custom_call.1} parent=1 // pred_region
      %s11 = ssub.s32 128, 128
      %12 = vsyncadd [#allocation3], %s11
      %s14 = sshll.u32 [#allocation2], 4
      %s15 = int_to_ptr.vmem [resolvable:$true] %s14
      %17 = dma.hbm_to_vmem [thread:$0]  %s0, 128, %s15, [#allocation3]
    $region5: #{tpu_custom_call.1} parent=1 // pred_fallthru
      _
    // Predicated region
    $region6: #{tpu_custom_call.1} parent=1 // pred_check
      _
    $region7: #{tpu_custom_call.1} parent=1 // pred_check_branch
      %19 = sbr.rel (0) target = $region9
    $region8: #{tpu_custom_call.1} parent=1 // pred_region
      %20 = dma.done [#allocation3], 128
    $region9: #{tpu_custom_call.1} parent=1 // pred_fallthru
      _
    %v21 = vld [vmem:[#allocation2] sm:$0xff]
    %22 = vst [vmem:[#allocation5] sm:$0xff] %v21
    // Predicated region
    $region10: #{tpu_custom_call.1} parent=1 // pred_check
      _
    $region11: #{tpu_custom_call.1} parent=1 // pred_check_branch
      %24 = sbr.rel (0) target = $region13
    $region12: #{tpu_custom_call.1} parent=1 // pred_region
      %s26 = ssub.s32 128, 128
      %27 = vsyncadd [#allocation4], %s26
      %s29 = sshll.u32 [#allocation5], 4
      %s30 = int_to_ptr.vmem [resolvable:$true] %s29
      %32 = dma.vmem_to_hbm [thread:$0]  %s30, 128, %s1, [#allocation4]
    $region13: #{tpu_custom_call.1} parent=1 // pred_fallthru
      _
    // Predicated region
    $region14: #{tpu_custom_call.1} parent=1 // pred_check
      _
    $region15: #{tpu_custom_call.1} parent=1 // pred_check_branch
      %34 = sbr.rel (0) target = $region17
    $region16: #{tpu_custom_call.1} parent=1 // pred_region
      %35 = dma.done [#allocation4], 128
    $region17: #{tpu_custom_call.1} parent=1 // pred_fallthru
      _
    %36 = vsyncpa [#allocation3], 1
    %37 = vsyncpa [#allocation4], 1

// kernel: tpu_custom_call.1
$region0: #{tpu_custom_call.1}
  #allocation0 [shape = 'u32[]', space=smem, size = 0x4, offset = 0x4, fixed_abs, tag = 'smem constant byte address 0x4 - core index']
  #allocation1 [shape = 'u32[144,128]{1,0:T(1,128)}', space=vmem, size = 0x12000, scoped, tag = 'internal scratch']
  %s0 = inlined_call_operand.hbm [shape: f32[16,32], index: 0, kind: input, shape index: {}]
  %s1 = inlined_call_operand.vmem [shape: f32[1,32], index: 1, kind: input, shape index: {}]
  %s2 = inlined_call_operand.vmem [shape: f32[1,32], index: 2, kind: input, shape index: {}]
  %s3 = inlined_call_operand.hbm [shape: bf16[32,96], index: 3, kind: input, shape index: {}]
  %s4 = inlined_call_operand.hbm [shape: bf16[16,96], index: 4, kind: output, shape index: {}]
  %s5 = sld [smem:[#allocation0]]
  $region34: #{tpu_custom_call.1} parent=0
    _
  %s7 = ssub.s32 1, %s5
  %s8 = scalar_select 0, %s7, %s5
  $region1: #{tpu_custom_call.1} parent=0
    #allocation2 [shape = 'u8[8192]{0}', space=vmem, size = 0x2000, scoped, tag = 'input window, operand 0, single buffered']
    #allocation3 [shape = 's32[1]{0}', space=sflag, size = 0x4, scoped, tag = 'scoped memory for tpu_custom_call.1']
    #allocation4 [shape = 's32[1]{0}', space=sflag, size = 0x4, scoped, tag = 'scoped memory for tpu_custom_call.1']
    #allocation5 [shape = 'u8[8192]{0}', space=vmem, size = 0x2000, scoped, tag = 'input window, operand 3, single buffered']
    #allocation6 [shape = 's32[1]{0}', space=sflag, size = 0x4, scoped, tag = 'scoped memory for tpu_custom_call.1']
    #allocation7 [shape = 'u8[4096]{0}', space=vmem, size = 0x1000, scoped, tag = 'output window, operand 0, single buffered']
    %9 = vsyncpa [#allocation3], 0
    %10 = vsyncpa [#allocation6], 0
    %11 = vsyncpa [#allocation4], 0
    // Predicated region
    $region2: #{tpu_custom_call.1} parent=1 // pred_check
      _
    $region3: #{tpu_custom_call.1} parent=1 // pred_check_branch
      %13 = sbr.rel (0) target = $region5
    $region4: #{tpu_custom_call.1} parent=1 // pred_region
      %s15 = ssub.s32 256, 256
      %16 = vsyncadd [#allocation3], %s15
      %s17 = sshll.u32 [#allocation2], 4
      %s18 = int_to_ptr.vmem [resolvable:$true] %s17
      %23 = dma.hbm_to_vmem [thread:$0]  %s0, 256, %s18, [#allocation3], 128, 128, 8
    $region5: #{tpu_custom_call.1} parent=1 // pred_fallthru
      _
    // Predicated region
    $region6: #{tpu_custom_call.1} parent=1 // pred_check
      _
    $region7: #{tpu_custom_call.1} parent=1 // pred_check_branch
      %25 = sbr.rel (0) target = $region9
    $region8: #{tpu_custom_call.1} parent=1 // pred_region
      _
    $region9: #{tpu_custom_call.1} parent=1 // pred_fallthru
      _
    // Predicated region
    $region10: #{tpu_custom_call.1} parent=1 // pred_check
      _
    $region11: #{tpu_custom_call.1} parent=1 // pred_check_branch
      %27 = sbr.rel (0) target = $region13
    $region12: #{tpu_custom_call.1} parent=1 // pred_region
      _
    $region13: #{tpu_custom_call.1} parent=1 // pred_fallthru
      _
    // Predicated region
    $region14: #{tpu_custom_call.1} parent=1 // pred_check
      _
    $region15: #{tpu_custom_call.1} parent=1 // pred_check_branch
      %29 = sbr.rel (0) target = $region17
    $region16: #{tpu_custom_call.1} parent=1 // pred_region
      %s31 = ssub.s32 256, 256
      %32 = vsyncadd [#allocation6], %s31
      %s33 = sshll.u32 [#allocation5], 4
      %s34 = int_to_ptr.vmem [resolvable:$true] %s33
      %39 = dma.hbm_to_vmem [thread:$0]  %s3, 256, %s34, [#allocation6], 64, 64, 4
    $region17: #{tpu_custom_call.1} parent=1 // pred_fallthru
      _
    // Predicated region
    $region18: #{tpu_custom_call.1} parent=1 // pred_check
      _
    $region19: #{tpu_custom_call.1} parent=1 // pred_check_branch
      %41 = sbr.rel (0) target = $region21
    $region20: #{tpu_custom_call.1} parent=1 // pred_region
      %42 = dma.done [#allocation3], 256
    $region21: #{tpu_custom_call.1} parent=1 // pred_fallthru
      _
    // Predicated region
    $region22: #{tpu_custom_call.1} parent=1 // pred_check
      _
    $region23: #{tpu_custom_call.1} parent=1 // pred_check_branch
      %44 = sbr.rel (0) target = $region25
    $region24: #{tpu_custom_call.1} parent=1 // pred_region
      %45 = dma.done [#allocation6], 256
    $region25: #{tpu_custom_call.1} parent=1 // pred_fallthru
      _
    %v47 = vld [vmem:[#allocation2] sm:$0xff]
    %v48 = vld [vmem:[#allocation2 + $0x8] sm:$0xff]
    %vm49 = vcmask 261120
    %v50 = vsel %vm49, %v47, 0.0
    %51 = vadd.xlane.f32.xlu0 %v50
    %v52 = vpop.xlane.xlu0 %51
    %v53 = vsel %vm49, %v48, 0.0
    %54 = vadd.xlane.f32.xlu0 %v53
    %v55 = vpop.xlane.xlu0 %54
    %v56 = vrcp.pop 32.0
    %v57 = vmul.f32 %v52, %v56
    %v58 = vmul.f32 %v55, %v56
    %v59 = vsub.f32 %v47, %v57
    %v60 = vsub.f32 %v48, %v58
    %v61 = vmul.f32 %v59, %v59
    %v62 = vmul.f32 %v60, %v60
    %v63 = vsel %vm49, %v61, 0.0
    %64 = vadd.xlane.f32.xlu0 %v63
    %v65 = vpop.xlane.xlu0 %64
    %v66 = vsel %vm49, %v62, 0.0
    %67 = vadd.xlane.f32.xlu0 %v66
    %v68 = vpop.xlane.xlu0 %67
    %v69 = vmul.f32 %v65, %v56
    %v70 = vmul.f32 %v68, %v56
    %v71 = vadd.f32 %v69, 1e-05
    %v72 = vadd.f32 %v70, 1e-05
    %v73 = vrsqrt.pop %v71
    %v74 = vrsqrt.pop %v72
    %v75 = vmul.f32 %v59, %v73
    %v76 = vmul.f32 %v60, %v74
    %v77 = vld [vmem:[%s1] sm:$0x1]
    %v79 = vlaneseq
    %v80 = vshrl.u32 %v79, 7
    %v81 = vsub.s32 0, %v80
    %v82 = vrot.slane %v77, %v81
    %v84 = vmul.f32 %v75, %v82
    %v85 = vmul.f32 %v76, %v82
    %v86 = vld [vmem:[%s2] sm:$0x1]
    %v88 = vlaneseq
    %v89 = vshrl.u32 %v88, 7
    %v90 = vsub.s32 0, %v89
    %v91 = vrot.slane %v86, %v90
    %v93 = vadd.f32 %v84, %v91
    %v94 = vadd.f32 %v85, %v91
    %v95 = vpack.c.bf16 %v94, %v93
    %v96 = vld [vmem:[#allocation5] sm:$0xf]
    %v97 = vld [vmem:[#allocation5 + $0x4] sm:$0xf]
    %v98 = vld [vmem:[#allocation5 + $0x8] sm:$0xf]
    %v99 = vld [vmem:[#allocation5 + $0xc] sm:$0xf]
    %v104 = vunpack.c.l.b16 %v96
    %v105 = vunpack.c.l.b16 %v97
    %v106 = vunpack.c.l.b16 %v98
    %v107 = vunpack.c.l.b16 %v99
    %v108 = vpack.c.b16 %v105, %v104
    %v109 = vpack.c.b16 %v107, %v106
    %v113 = vsel %vm49, %v95, 0
    %115 = vmatprep.subr.bf16.mxu0 0
    %116 = vmatpush1.bf16.msra.mxu0 0
    %117 = vmatprep.subr.bf16.mxu0 0
    %118 = vmatpush1.bf16.msra.mxu0 0
    %119 = vmatprep.subr.bf16.mxu0 0
    %120 = vmatpush1.bf16.msra.mxu0 0
    %121 = vmatprep.subr.bf16.mxu0 0
    %122 = vmatpush1.bf16.msra.mxu0 0
    %123 = vmatprep.subr.bf16.mxu0 0
    %124 = vmatpush1.bf16.msra.mxu0 0
    %125 = vmatprep.subr.bf16.mxu0 0
    %126 = vmatpush1.bf16.msra.mxu0 0
    %127 = vmatprep.subr.bf16.mxu0 0
    %128 = vmatpush1.bf16.msra.mxu0 %v109
    %129 = vmatprep.subr.bf16.mxu0 0
    %130 = vmatpush1.bf16.msra.mxu0 %v108
    %131 = vmatprep.subr.bf16.mxu0 0
    %132 = vmatpush2.bf16.msra.mxu0 0
    %133 = vmatprep.subr.bf16.mxu0 0
    %134 = vmatpush2.bf16.msra.mxu0 0
    %135 = vmatprep.subr.bf16.mxu0 0
    %136 = vmatpush2.bf16.msra.mxu0 0
    %137 = vmatprep.subr.bf16.mxu0 0
    %138 = vmatpush2.bf16.msra.mxu0 0
    %139 = vmatprep.subr.bf16.mxu0 0
    %140 = vmatpush2.bf16.msra.mxu0 0
    %141 = vmatprep.subr.bf16.mxu0 0
    %142 = vmatpush2.bf16.msra.mxu0 0
    %143 = vmatprep.subr.bf16.mxu0 0
    %144 = vmatpush2.bf16.msra.mxu0 0
    %145 = vmatprep.subr.bf16.mxu0 0
    %146 = vmatpush2.bf16.msra.mxu0 0
    %147 = vmatprep.mubr.bf16.mxu0 0
    %148 = vmatmul.mubr.bf16.gmra.mxu0 %v113
    %v149 = vpop.f32.mrf.mxu0
    %v150 = vadd.f32 0.0, %v149
    %v151 = vpop.f32.mrf.mxu0
    %v152 = vpop.f32.mrf.mxu0
    %v153 = vadd.f32 0.0, %v152
    %v154 = vpop.f32.mrf.mxu0
    %155 = vdwg.mxu0
    %v156 = vpack.c.bf16 %v153, %v150
    %v158 = vunpack.c.l.b16 %v156
    %v159 = vunpack.c.h.b16 %v156
    %v160 = vpack.c.b16 %v158, %v158
    %v161 = vpack.c.b16 %v159, %v159
    %vm164 = vcmask 781312
    %165 = vst.msk [vmem:[#allocation7] sm:$0xf] %vm164, %v160
    %166 = vst.msk [vmem:[#allocation7 + $0x4] sm:$0xf] %vm164, %v161
    // Predicated region
    $region26: #{tpu_custom_call.1} parent=1 // pred_check
      _
    $region27: #{tpu_custom_call.1} parent=1 // pred_check_branch
      %168 = sbr.rel (0) target = $region29
    $region28: #{tpu_custom_call.1} parent=1 // pred_region
      %s170 = ssub.s32 128, 128
      %171 = vsyncadd [#allocation4], %s170
      %s172 = sshll.u32 [#allocation7], 4
      %s173 = int_to_ptr.vmem [resolvable:$true] %s172
      %178 = dma.vmem_to_hbm [thread:$0]  %s173, 128, %s4, [#allocation4], 64, 64, 4
    $region29: #{tpu_custom_call.1} parent=1 // pred_fallthru
      _
    // Predicated region
    $region30: #{tpu_custom_call.1} parent=1 // pred_check
      _
    $region31: #{tpu_custom_call.1} parent=1 // pred_check_branch
      %180 = sbr.rel (0) target = $region33
    $region32: #{tpu_custom_call.1} parent=1 // pred_region
      %181 = dma.done [#allocation4], 128
    $region33: #{tpu_custom_call.1} parent=1 // pred_fallthru
      _
    %182 = vsyncpa [#allocation3], 1
    %183 = vsyncpa [#allocation6], 1
    %184 = vsyncpa [#allocation4], 1

</llo_original>
